<compile_context>
chip_gen: v7x
topology: tpu7x:2x2x1
jax: 0.10.0
libtpu: 0.0.40
codegen_flags: <defaults>
</compile_context>

<pallas_src>
import functools
import numpy as np
import jax
import jax.numpy as jnp
from jax.experimental import pallas as pl
from jax.experimental.pallas import tpu as pltpu


def csl2_kernel(ctx1_ref, ctx2_ref, x_ref,
                w_ref, b_ref, wc1_ref, bc1_ref, wc2_ref, bc2_ref,
                out_ref, *, mxu_dtype=jnp.float32):
    f32 = jnp.float32
    tb, tn, d_in = x_ref.shape
    d_out = w_ref.shape[1]

    # ---- context path: one fused MXU push per context -> [gate_logits | bias] ----
    c1 = jnp.dot(ctx1_ref[...], wc1_ref[...], preferred_element_type=f32) + bc1_ref[...]
    c2 = jnp.dot(ctx2_ref[...], wc2_ref[...], preferred_element_type=f32) + bc2_ref[...]
    gate = jax.nn.sigmoid(c1[:, :d_out]) * jax.nn.sigmoid(c2[:, :d_out])   # [tb, Dout]
    hbias = c1[:, d_out:] + c2[:, d_out:]                                  # [tb, Dout]

    # ---- main Linear: one tall matmul over the flattened (tb*tn) rows ----
    x2d = x_ref[...].reshape(tb * tn, d_in).astype(mxu_dtype)
    y2d = jnp.dot(x2d, w_ref[...].astype(mxu_dtype),
                  preferred_element_type=f32) + b_ref[...]                 # [tb*tn, Dout]
    y = y2d.reshape(tb, tn, d_out)

    # gating / hyper-bias in f32 on the VPU (broadcast over the point axis)
    out_ref[...] = (y * gate[:, None, :] + hbias[:, None, :]).astype(out_ref.dtype)


def _auto_tiles(B, N, Din, Dout, budget_bytes=4 << 20):
    """Largest (tile_b, tile_n) whose f32 in+out slab fits `budget_bytes`, with
    tiles either equal to the full dim or a multiple of 8 that divides it."""
    def pick(full, per_unit):
        cap = max(1, budget_bytes // max(per_unit, 1))
        if cap >= full:
            return full
        t = (min(cap, full) // 8) * 8
        while t >= 8 and full % t:
            t -= 8
        return t if t >= 8 else full

    per_n = 4 * (Din + Dout)
    tile_n = pick(N, per_n)
    tile_b = pick(B, per_n * tile_n)
    return tile_b, tile_n


def concat_squash_linear_2inputs(ctx1, ctx2, x, params, *,
                                 tile_b=None, tile_n=None, mxu_dtype=jnp.float32):
    B, N, Din = x.shape
    C1, C2 = ctx1.shape[1], ctx2.shape[1]
    w, b, wg1, bg1, wb1, wg2, bg2, wb2 = params
    Dout = w.shape[1]

    # Fuse each context's gate + bias projection: ctx @ [Wg | Wb] + [bg | 0].
    wc1 = jnp.concatenate([wg1, wb1], axis=1)                                  # [C1, 2*Dout]
    bc1 = jnp.concatenate([bg1, jnp.zeros((1, Dout), bg1.dtype)], axis=1)      # [1, 2*Dout]
    wc2 = jnp.concatenate([wg2, wb2], axis=1)                                  # [C2, 2*Dout]
    bc2 = jnp.concatenate([bg2, jnp.zeros((1, Dout), bg2.dtype)], axis=1)      # [1, 2*Dout]

    auto_b, auto_n = _auto_tiles(B, N, Din, Dout)
    tile_b = auto_b if tile_b is None else tile_b
    tile_n = auto_n if tile_n is None else tile_n
    assert B % tile_b == 0 and N % tile_n == 0, "tile sizes must divide B and N"
    grid = (B // tile_b, N // tile_n)

    const2 = lambda i, j: (0, 0)   # weights/biases: same block every step -> VMEM-resident
    in_specs = [
        pl.BlockSpec((tile_b, C1), lambda i, j: (i, 0)),
        pl.BlockSpec((tile_b, C2), lambda i, j: (i, 0)),
        pl.BlockSpec((tile_b, tile_n, Din), lambda i, j: (i, j, 0)),
        pl.BlockSpec((Din, Dout), const2),
        pl.BlockSpec((1, Dout), const2),
        pl.BlockSpec((C1, 2 * Dout), const2),
        pl.BlockSpec((1, 2 * Dout), const2),
        pl.BlockSpec((C2, 2 * Dout), const2),
        pl.BlockSpec((1, 2 * Dout), const2),
    ]
    out_specs = pl.BlockSpec((tile_b, tile_n, Dout), lambda i, j: (i, j, 0))

    # Scoped VMEM: double-buffered activation tiles + resident weights + headroom.
    tile_bytes = 4 * (tile_b * tile_n * (Din + Dout) + tile_b * (C1 + C2))
    weight_bytes = 4 * (Din * Dout + Dout + (C1 + C2 + 2) * 2 * Dout)
    vmem_limit = int(min(64 << 20, max(8 << 20, 4 * tile_bytes + 2 * weight_bytes + (2 << 20))))

    kernel = functools.partial(csl2_kernel, mxu_dtype=mxu_dtype)
    return pl.pallas_call(
        kernel,
        out_shape=jax.ShapeDtypeStruct((B, N, Dout), x.dtype),
        grid_spec=pltpu.PrefetchScalarGridSpec(
            num_scalar_prefetch=0,
            grid=grid,
            in_specs=in_specs,
            out_specs=out_specs,
        ),
        compiler_params=pltpu.CompilerParams(
            dimension_semantics=("parallel", "parallel"),
            vmem_limit_bytes=vmem_limit,
        ),
    )(ctx1, ctx2, x, w, b, wc1, bc1, wc2, bc2)


# ------------- parameter construction (PyTorch-style init, weight_norm resolved) -------------
def _init_weightnorm_linear(key, in_dim, out_dim, use_bias=True):
    """Returns (W_T [in, out], b [1, out]).  weight_norm(dim=0): g init'd to row norm."""
    k1, k2 = jax.random.split(key)
    bound = 1.0 / np.sqrt(in_dim)
    v = jax.random.uniform(k1, (out_dim, in_dim), jnp.float32, -bound, bound)
    row_norm = jnp.sqrt(jnp.sum(v * v, axis=1, keepdims=True))
    w = row_norm * v / row_norm          # effective weight after weight_norm at init
    if use_bias:
        b = jax.random.uniform(k2, (1, out_dim), jnp.float32, -bound, bound)
    else:
        b = jnp.zeros((1, out_dim), jnp.float32)
    return w.T.astype(jnp.float32), b.astype(jnp.float32)


def make_params(key, dim_in, dim_out, dim_ctx1, dim_ctx2):
    ks = jax.random.split(key, 5)
    w, b = _init_weightnorm_linear(ks[0], dim_in, dim_out, True)          # _layer
    wb1, _ = _init_weightnorm_linear(ks[1], dim_ctx1, dim_out, False)     # _hyper_bias1
    wg1, bg1 = _init_weightnorm_linear(ks[2], dim_ctx1, dim_out, True)    # _hyper_gate1
    wb2, _ = _init_weightnorm_linear(ks[3], dim_ctx2, dim_out, False)     # _hyper_bias2
    wg2, bg2 = _init_weightnorm_linear(ks[4], dim_ctx2, dim_out, True)    # _hyper_gate2
    return (w, b, wg1, bg1, wb1, wg2, bg2, wb2)


# ------------------------- pure-JAX reference (mirrors the torch forward) -------------------------
def csl2_reference(ctx1, ctx2, x, params):
    w, b, wg1, bg1, wb1, wg2, bg2, wb2 = params
    gate1 = jax.nn.sigmoid(ctx1 @ wg1 + bg1)
    bias1 = ctx1 @ wb1
    gate2 = jax.nn.sigmoid(ctx2 @ wg2 + bg2)
    bias2 = ctx2 @ wb2
    y = jnp.einsum('bnd,do->bno', x, w) + b
    return (y * gate1[:, None, :] * gate2[:, None, :]
            + bias1[:, None, :] + bias2[:, None, :])


if __name__ == "__main__":
    B, N = 16, 16
    dim_in, dim_out = 32, 32
    dim_ctx1, dim_ctx2 = 16, 8

    key = jax.random.PRNGKey(0)
    kp, k1, k2, kx = jax.random.split(key, 4)
    params = make_params(kp, dim_in, dim_out, dim_ctx1, dim_ctx2)
    ctx1 = jax.random.normal(k1, (B, dim_ctx1), jnp.float32)
    ctx2 = jax.random.normal(k2, (B, dim_ctx2), jnp.float32)
    x = jax.random.normal(kx, (B, N, dim_in), jnp.float32)

    # Force a 2x2 grid (tile_b=8, tile_n=8) so multi-step pipelining is exercised.
    out = jax.block_until_ready(
        concat_squash_linear_2inputs(ctx1, ctx2, x, params, tile_b=8, tile_n=8))

    ref = csl2_reference(ctx1, ctx2, x, params)
    assert out.shape == (B, N, dim_out)
    assert np.allclose(np.asarray(out), np.asarray(ref), atol=1e-4, rtol=1e-4)

    print("KERNEL_OK")
</pallas_src>

<mosaic_0001>
module attributes {stable_mosaic.version = 11 : i64} {
  func.func @csl2_kernel(%arg0: i32, %arg1: i32, %arg2: memref<8x16xf32, #tpu.memory_space<vmem>>, %arg3: memref<8x8xf32, #tpu.memory_space<vmem>>, %arg4: memref<8x8x32xf32, #tpu.memory_space<vmem>>, %arg5: memref<32x32xf32, #tpu.memory_space<vmem>>, %arg6: memref<1x32xf32, #tpu.memory_space<vmem>>, %arg7: memref<16x64xf32, #tpu.memory_space<vmem>>, %arg8: memref<1x64xf32, #tpu.memory_space<vmem>>, %arg9: memref<8x64xf32, #tpu.memory_space<vmem>>, %arg10: memref<1x64xf32, #tpu.memory_space<vmem>>, %arg11: memref<8x8x32xf32, #tpu.memory_space<vmem>>) attributes {dimension_semantics = [#tpu.dimension_semantics<parallel>, #tpu.dimension_semantics<parallel>], iteration_bounds = array<i64: 2, 2>, scalar_prefetch = 0 : i64, scratch_operands = 0 : i64, tpu.core_type = #tpu.core_type<tc>, window_params = [{transform_indices = @transform_0, window_bounds = array<i64: 8, 16>}, {transform_indices = @transform_1, window_bounds = array<i64: 8, 8>}, {transform_indices = @transform_2, window_bounds = array<i64: 8, 8, 32>}, {pipeline_mode = #tpu.pipeline_mode<synchronous>, transform_indices = @transform_3, window_bounds = array<i64: 32, 32>}, {pipeline_mode = #tpu.pipeline_mode<synchronous>, transform_indices = @transform_4, window_bounds = array<i64: 1, 32>}, {pipeline_mode = #tpu.pipeline_mode<synchronous>, transform_indices = @transform_5, window_bounds = array<i64: 16, 64>}, {pipeline_mode = #tpu.pipeline_mode<synchronous>, transform_indices = @transform_6, window_bounds = array<i64: 1, 64>}, {pipeline_mode = #tpu.pipeline_mode<synchronous>, transform_indices = @transform_7, window_bounds = array<i64: 8, 64>}, {pipeline_mode = #tpu.pipeline_mode<synchronous>, transform_indices = @transform_8, window_bounds = array<i64: 1, 64>}, {transform_indices = @transform_9, window_bounds = array<i64: 8, 8, 32>}]} {
    %c0 = arith.constant 0 : index
    %c0_0 = arith.constant 0 : index
    %0 = vector.load %arg2[%c0, %c0_0] : memref<8x16xf32, #tpu.memory_space<vmem>>, vector<8x16xf32>
    %c0_1 = arith.constant 0 : index
    %c0_2 = arith.constant 0 : index
    %1 = vector.load %arg7[%c0_1, %c0_2] : memref<16x64xf32, #tpu.memory_space<vmem>>, vector<16x64xf32>
    %cst = arith.constant dense<0.000000e+00> : vector<8x64xf32>
    %2 = tpu.matmul %0, %1, %cst {dimension_numbers = #tpu.dot_dimension_numbers<[1], [0], [0], [1], [0, 0, 1, 1], [], []>} : vector<8x16xf32>, vector<16x64xf32>, vector<8x64xf32> -> vector<8x64xf32>
    %c0_3 = arith.constant 0 : index
    %c0_4 = arith.constant 0 : index
    %3 = vector.load %arg8[%c0_3, %c0_4] : memref<1x64xf32, #tpu.memory_space<vmem>>, vector<1x64xf32>
    %4 = vector.broadcast %3 : vector<1x64xf32> to vector<8x64xf32>
    %5 = arith.addf %2, %4 : vector<8x64xf32>
    %c0_5 = arith.constant 0 : index
    %c0_6 = arith.constant 0 : index
    %6 = vector.load %arg3[%c0_5, %c0_6] : memref<8x8xf32, #tpu.memory_space<vmem>>, vector<8x8xf32>
    %c0_7 = arith.constant 0 : index
    %c0_8 = arith.constant 0 : index
    %7 = vector.load %arg9[%c0_7, %c0_8] : memref<8x64xf32, #tpu.memory_space<vmem>>, vector<8x64xf32>
    %cst_9 = arith.constant dense<0.000000e+00> : vector<8x64xf32>
    %8 = tpu.matmul %6, %7, %cst_9 {dimension_numbers = #tpu.dot_dimension_numbers<[1], [0], [0], [1], [0, 0, 1, 1], [], []>} : vector<8x8xf32>, vector<8x64xf32>, vector<8x64xf32> -> vector<8x64xf32>
    %c0_10 = arith.constant 0 : index
    %c0_11 = arith.constant 0 : index
    %9 = vector.load %arg10[%c0_10, %c0_11] : memref<1x64xf32, #tpu.memory_space<vmem>>, vector<1x64xf32>
    %10 = vector.broadcast %9 : vector<1x64xf32> to vector<8x64xf32>
    %11 = arith.addf %8, %10 : vector<8x64xf32>
    %12 = vector.extract_strided_slice %5 {offsets = [0, 0], sizes = [8, 32], strides = [1, 1]} : vector<8x64xf32> to vector<8x32xf32>
    %13 = arith.negf %12 : vector<8x32xf32>
    %14 = math.exp %13 : vector<8x32xf32>
    %cst_12 = arith.constant 1.000000e+00 : f32
    %15 = vector.broadcast %cst_12 : f32 to vector<8x32xf32>
    %16 = arith.addf %15, %14 : vector<8x32xf32>
    %17 = arith.divf %15, %16 : vector<8x32xf32>
    %18 = vector.extract_strided_slice %11 {offsets = [0, 0], sizes = [8, 32], strides = [1, 1]} : vector<8x64xf32> to vector<8x32xf32>
    %19 = arith.negf %18 : vector<8x32xf32>
    %20 = math.exp %19 : vector<8x32xf32>
    %cst_13 = arith.constant 1.000000e+00 : f32
    %21 = vector.broadcast %cst_13 : f32 to vector<8x32xf32>
    %22 = arith.addf %21, %20 : vector<8x32xf32>
    %23 = arith.divf %21, %22 : vector<8x32xf32>
    %24 = arith.mulf %17, %23 : vector<8x32xf32>
    %25 = vector.extract_strided_slice %5 {offsets = [0, 32], sizes = [8, 32], strides = [1, 1]} : vector<8x64xf32> to vector<8x32xf32>
    %26 = vector.extract_strided_slice %11 {offsets = [0, 32], sizes = [8, 32], strides = [1, 1]} : vector<8x64xf32> to vector<8x32xf32>
    %27 = arith.addf %25, %26 : vector<8x32xf32>
    %c0_14 = arith.constant 0 : index
    %c0_15 = arith.constant 0 : index
    %c0_16 = arith.constant 0 : index
    %28 = vector.load %arg4[%c0_14, %c0_15, %c0_16] : memref<8x8x32xf32, #tpu.memory_space<vmem>>, vector<8x8x32xf32>
    %29 = vector.shape_cast %28 : vector<8x8x32xf32> to vector<64x32xf32>
    %c0_17 = arith.constant 0 : index
    %c0_18 = arith.constant 0 : index
    %30 = vector.load %arg5[%c0_17, %c0_18] : memref<32x32xf32, #tpu.memory_space<vmem>>, vector<32x32xf32>
    %cst_19 = arith.constant dense<0.000000e+00> : vector<64x32xf32>
    %31 = tpu.matmul %29, %30, %cst_19 {dimension_numbers = #tpu.dot_dimension_numbers<[1], [0], [0], [1], [0, 0, 1, 1], [], []>} : vector<64x32xf32>, vector<32x32xf32>, vector<64x32xf32> -> vector<64x32xf32>
    %c0_20 = arith.constant 0 : index
    %c0_21 = arith.constant 0 : index
    %32 = vector.load %arg6[%c0_20, %c0_21] : memref<1x32xf32, #tpu.memory_space<vmem>>, vector<1x32xf32>
    %33 = vector.broadcast %32 : vector<1x32xf32> to vector<64x32xf32>
    %34 = arith.addf %31, %33 : vector<64x32xf32>
    %35 = vector.shape_cast %34 : vector<64x32xf32> to vector<8x8x32xf32>
    %36 = vector.shape_cast %24 : vector<8x32xf32> to vector<8x1x32xf32>
    %37 = vector.broadcast %36 : vector<8x1x32xf32> to vector<8x8x32xf32>
    %38 = arith.mulf %35, %37 : vector<8x8x32xf32>
    %39 = vector.shape_cast %27 : vector<8x32xf32> to vector<8x1x32xf32>
    %40 = vector.broadcast %39 : vector<8x1x32xf32> to vector<8x8x32xf32>
    %41 = arith.addf %38, %40 : vector<8x8x32xf32>
    %c0_22 = arith.constant 0 : index
    %c0_23 = arith.constant 0 : index
    %c0_24 = arith.constant 0 : index
    %42 = vector.load %arg11[%c0_22, %c0_23, %c0_24] : memref<8x8x32xf32, #tpu.memory_space<vmem>>, vector<8x8x32xf32>
    tpu.vector_store %arg11[%c0_22, %c0_23, %c0_24], %41 {strides = array<i32>} : memref<8x8x32xf32, #tpu.memory_space<vmem>>, vector<8x8x32xf32>,
    return
  }
  func.func @transform_0(%arg0: i32, %arg1: i32) -> (i32, i32) {
    %c0_i32 = arith.constant 0 : i32
    %c0_i32_0 = arith.constant 0 : i32
    return %arg0, %c0_i32 : i32, i32
  }
  func.func @transform_1(%arg0: i32, %arg1: i32) -> (i32, i32) {
    %c0_i32 = arith.constant 0 : i32
    %c0_i32_0 = arith.constant 0 : i32
    return %arg0, %c0_i32 : i32, i32
  }
  func.func @transform_2(%arg0: i32, %arg1: i32) -> (i32, i32, i32) {
    %c0_i32 = arith.constant 0 : i32
    %c0_i32_0 = arith.constant 0 : i32
    return %arg0, %arg1, %c0_i32 : i32, i32, i32
  }
  func.func @transform_3(%arg0: i32, %arg1: i32) -> (i32, i32) {
    %c0_i32 = arith.constant 0 : i32
    %c0_i32_0 = arith.constant 0 : i32
    %c0_i32_1 = arith.constant 0 : i32
    return %c0_i32, %c0_i32_0 : i32, i32
  }
  func.func @transform_4(%arg0: i32, %arg1: i32) -> (i32, i32) {
    %c0_i32 = arith.constant 0 : i32
    %c0_i32_0 = arith.constant 0 : i32
    %c0_i32_1 = arith.constant 0 : i32
    return %c0_i32, %c0_i32_0 : i32, i32
  }
  func.func @transform_5(%arg0: i32, %arg1: i32) -> (i32, i32) {
    %c0_i32 = arith.constant 0 : i32
    %c0_i32_0 = arith.constant 0 : i32
    %c0_i32_1 = arith.constant 0 : i32
    return %c0_i32, %c0_i32_0 : i32, i32
  }
  func.func @transform_6(%arg0: i32, %arg1: i32) -> (i32, i32) {
    %c0_i32 = arith.constant 0 : i32
    %c0_i32_0 = arith.constant 0 : i32
    %c0_i32_1 = arith.constant 0 : i32
    return %c0_i32, %c0_i32_0 : i32, i32
  }
  func.func @transform_7(%arg0: i32, %arg1: i32) -> (i32, i32) {
    %c0_i32 = arith.constant 0 : i32
    %c0_i32_0 = arith.constant 0 : i32
    %c0_i32_1 = arith.constant 0 : i32
    return %c0_i32, %c0_i32_0 : i32, i32
  }
  func.func @transform_8(%arg0: i32, %arg1: i32) -> (i32, i32) {
    %c0_i32 = arith.constant 0 : i32
    %c0_i32_0 = arith.constant 0 : i32
    %c0_i32_1 = arith.constant 0 : i32
    return %c0_i32, %c0_i32_0 : i32, i32
  }
  func.func @transform_9(%arg0: i32, %arg1: i32) -> (i32, i32, i32) {
    %c0_i32 = arith.constant 0 : i32
    %c0_i32_0 = arith.constant 0 : i32
    return %arg0, %arg1, %c0_i32 : i32, i32, i32
  }
}

</mosaic_0001>

<llo_original>
// kernel: tpu_custom_call.1
$region0: #{tpu_custom_call.1}
  #allocation0 [shape = 'u32[]', space=smem, size = 0x4, offset = 0x4, fixed_abs, tag = 'smem constant byte address 0x4 - core index']
  #allocation1 [shape = 'u32[144,128]{1,0:T(1,128)}', space=vmem, size = 0x12000, scoped, tag = 'internal scratch']
  %s0 = inlined_call_operand.hbm [shape: f32[16,16], index: 0, kind: input, shape index: {}]
  %s1 = inlined_call_operand.vmem [shape: f32[16,8], index: 1, kind: input, shape index: {}]
  %s2 = inlined_call_operand.hbm [shape: f32[16,16,32], index: 2, kind: input, shape index: {}]
  %s3 = inlined_call_operand.vmem [shape: f32[32,32], index: 3, kind: input, shape index: {}]
  %s4 = inlined_call_operand.vmem [shape: f32[1,32], index: 4, kind: input, shape index: {}]
  %s5 = inlined_call_operand.hbm [shape: f32[16,64], index: 5, kind: input, shape index: {}]
  %s6 = inlined_call_operand.vmem [shape: f32[1,64], index: 6, kind: input, shape index: {}]
  %s7 = inlined_call_operand.vmem [shape: f32[8,64], index: 7, kind: input, shape index: {}]
  %s8 = inlined_call_operand.vmem [shape: f32[1,64], index: 8, kind: input, shape index: {}]
  %s9 = inlined_call_operand.hbm [shape: f32[16,16,32], index: 9, kind: output, shape index: {}]
  %s10 = sld [smem:[#allocation0]]
  $region81: #{tpu_custom_call.1} parent=0
    _
  %s12 = ssub.s32 1, %s10
  %s13 = scalar_select 0, %s12, %s10
  $region1: #{tpu_custom_call.1} parent=0
    #allocation2 [shape = 'u8[8192]{0}', space=vmem, size = 0x2000, scoped, tag = 'input window, operand 0']
    #allocation3 [shape = 's32[2]{0}', space=sflag, size = 0x8, scoped, tag = 'scoped memory for tpu_custom_call.1']
    #allocation4 [shape = 's32[2]{0}', space=sflag, size = 0x8, scoped, tag = 'scoped memory for tpu_custom_call.1']
    #allocation5 [shape = 'u8[65536]{0}', space=vmem, size = 0x10000, scoped, tag = 'input window, operand 2']
    #allocation6 [shape = 's32[2]{0}', space=sflag, size = 0x8, scoped, tag = 'scoped memory for tpu_custom_call.1']
    #allocation7 [shape = 'u8[8192]{0}', space=vmem, size = 0x2000, scoped, tag = 'input window, operand 5, single buffered']
    #allocation8 [shape = 'u8[65536]{0}', space=vmem, size = 0x10000, scoped, tag = 'output window, operand 0']
    %14 = vsyncpa [#allocation3], 0
    %s15 = scalar_lea.sflag [#allocation3], 1
    %16 = vsyncpa %s15, 0
    %17 = vsyncpa [#allocation6], 0
    %s18 = scalar_lea.sflag [#allocation6], 1
    %19 = vsyncpa %s18, 0
    %20 = vsyncpa [#allocation4], 0
    %s21 = scalar_lea.sflag [#allocation4], 1
    %22 = vsyncpa %s21, 0
    loop: start=0, step=1, limit=6
    $region2: #{tpu_custom_call.1} parent=1 // loop_pre_header
      _
    $region3: #{tpu_custom_call.1} parent=1 // loop_header
      %s24 = sphi 0, %s28
      %p25 = scmp.ge.s32.totalorder %s24, 6
      %s31 = sphi 0, %s43
      %s32 = sphi 0, %s39
      %s33 = sphi 0, %s31
      %s34 = sphi 0, %s32
      %s35 = sphi 0, %s33
      %s36 = sphi 0, %s34
      %s46 = sphi 0, %s48
      %s49 = sphi 0, %s46
      %s50 = sphi 0, %s49
      %s66 = sphi 0, %s50
      %s72 = sphi 0, %s74
      %s75 = sphi 0, %s72
      %s76 = sphi 0, %s75
      %s92 = sphi 0, %s76
      %s100 = sphi 0, %s102
      %s103 = sphi 0, %s100
      %s104 = sphi 0, %s103
      %s120 = sphi 0, %s104
      %s124 = sphi 0, %s124
      %s126 = sphi 0, %s124
      %s127 = sphi 0, %s126
      %s141 = sphi 0, %s127
      %s145 = sphi 0, %s145
      %s147 = sphi 0, %s145
      %s148 = sphi 0, %s147
      %s162 = sphi 0, %s148
      %s166 = sphi 0, %s166
      %s168 = sphi 0, %s166
      %s169 = sphi 0, %s168
      %s183 = sphi 0, %s169
      %s187 = sphi 0, %s187
      %s189 = sphi 0, %s187
      %s190 = sphi 0, %s189
      %s204 = sphi 0, %s190
      %s208 = sphi 0, %s208
      %s210 = sphi 0, %s208
      %s211 = sphi 0, %s210
      %s225 = sphi 0, %s211
      %s229 = sphi 0, %s229
      %s231 = sphi 0, %s229
      %s232 = sphi 0, %s231
      %s246 = sphi 0, %s232
      %s254 = sphi 0, %s256
      %s257 = sphi 0, %s254
      %s258 = sphi 0, %s257
      %s274 = sphi 0, %s258
    $region4: #{tpu_custom_call.1} parent=1 // loop_header_branch
      %27 = sbr.rel (%p25) target = $region8
    $region5: #{tpu_custom_call.1} parent=1 // loop_body
      %s29 = ssub.s32 %s24, 1
      %s30 = ssub.s32 %s24, 2
      %s37 = sadd.s32 1, %s32
      %p38 = scmp.ge.s32.totalorder %s37, 2
      %s39 = scalar_select %p38, 0, %s37
      %s40 = sadd.s32 1, %s31
      %s41 = scalar_select %p38, %s40, %s31
      %p42 = scmp.ge.s32.totalorder %s41, 2
      %s43 = scalar_select %p42, 0, %s41
      %s44 = ssub.s32 %s31, %s43
      %p45 = scmp.eq.s32.totalorder %s44, 0
      %s47 = sadd.s32 %s46, 1
      %s48 = scalar_select %p45, %s46, %s47
      %p51 = pneg %p45
      %p52 = scmp.eq.s32.totalorder %s24, 3
      %p53 = por %p51, %p52
      %p54 = scmp.ne.s32.totalorder %s46, %s49
      %p55 = scmp.eq.s32.totalorder %s24, 0
      %p56 = por %p54, %p55
      %p57 = scmp.ne.s32.totalorder %s46, %s49
      %p58 = scmp.eq.s32.totalorder %s29, 3
      %p59 = por %p57, %p58
      %p60 = scmp.ne.s32.totalorder %s49, %s50
      %p61 = scmp.eq.s32.totalorder %s29, 0
      %p62 = por %p60, %p61
      %p63 = scmp.ne.s32.totalorder %s49, %s50
      %p64 = scmp.eq.s32.totalorder %s30, 3
      %p65 = por %p63, %p64
      %p67 = scmp.ne.s32.totalorder %s50, %s66
      %p68 = scmp.eq.s32.totalorder %s30, 0
      %p69 = por %p67, %p68
      %s70 = ssub.s32 %s31, %s43
      %p71 = scmp.eq.s32.totalorder %s70, 0
      %s73 = sadd.s32 %s72, 1
      %s74 = scalar_select %p71, %s72, %s73
      %p77 = pneg %p71
      %p78 = scmp.eq.s32.totalorder %s24, 3
      %p79 = por %p77, %p78
      %p80 = scmp.ne.s32.totalorder %s72, %s75
      %p81 = scmp.eq.s32.totalorder %s24, 0
      %p82 = por %p80, %p81
      %p83 = scmp.ne.s32.totalorder %s72, %s75
      %p84 = scmp.eq.s32.totalorder %s29, 3
      %p85 = por %p83, %p84
      %p86 = scmp.ne.s32.totalorder %s75, %s76
      %p87 = scmp.eq.s32.totalorder %s29, 0
      %p88 = por %p86, %p87
      %p89 = scmp.ne.s32.totalorder %s75, %s76
      %p90 = scmp.eq.s32.totalorder %s30, 3
      %p91 = por %p89, %p90
      %p93 = scmp.ne.s32.totalorder %s76, %s92
      %p94 = scmp.eq.s32.totalorder %s30, 0
      %p95 = por %p93, %p94
      %s96 = ssub.s32 %s31, %s43
      %s97 = ssub.s32 %s32, %s39
      %s98 = sor.u32 %s96, %s97
      %p99 = scmp.eq.s32.totalorder %s98, 0
      %s101 = sadd.s32 %s100, 1
      %s102 = scalar_select %p99, %s100, %s101
      %p105 = pneg %p99
      %p106 = scmp.eq.s32.totalorder %s24, 3
      %p107 = por %p105, %p106
      %p108 = scmp.ne.s32.totalorder %s100, %s103
      %p109 = scmp.eq.s32.totalorder %s24, 0
      %p110 = por %p108, %p109
      %p111 = scmp.ne.s32.totalorder %s100, %s103
      %p112 = scmp.eq.s32.totalorder %s29, 3
      %p113 = por %p111, %p112
      %p114 = scmp.ne.s32.totalorder %s103, %s104
      %p115 = scmp.eq.s32.totalorder %s29, 0
      %p116 = por %p114, %p115
      %p117 = scmp.ne.s32.totalorder %s103, %s104
      %p118 = scmp.eq.s32.totalorder %s30, 3
      %p119 = por %p117, %p118
      %p121 = scmp.ne.s32.totalorder %s104, %s120
      %p122 = scmp.eq.s32.totalorder %s30, 0
      %p123 = por %p121, %p122
      %s125 = sadd.s32 %s124, 1
      %p128 = scmp.eq.s32.totalorder %s24, 3
      %p129 = scmp.ne.s32.totalorder %s124, %s126
      %p130 = scmp.eq.s32.totalorder %s24, 0
      %p131 = por %p129, %p130
      %p132 = scmp.ne.s32.totalorder %s124, %s126
      %p133 = scmp.eq.s32.totalorder %s29, 3
      %p134 = por %p132, %p133
      %p135 = scmp.ne.s32.totalorder %s126, %s127
      %p136 = scmp.eq.s32.totalorder %s29, 0
      %p137 = por %p135, %p136
      %p138 = scmp.ne.s32.totalorder %s126, %s127
      %p139 = scmp.eq.s32.totalorder %s30, 3
      %p140 = por %p138, %p139
      %p142 = scmp.ne.s32.totalorder %s127, %s141
      %p143 = scmp.eq.s32.totalorder %s30, 0
      %p144 = por %p142, %p143
      %s146 = sadd.s32 %s145, 1
      %p149 = scmp.eq.s32.totalorder %s24, 3
      %p150 = scmp.ne.s32.totalorder %s145, %s147
      %p151 = scmp.eq.s32.totalorder %s24, 0
      %p152 = por %p150, %p151
      %p153 = scmp.ne.s32.totalorder %s145, %s147
      %p154 = scmp.eq.s32.totalorder %s29, 3
      %p155 = por %p153, %p154
      %p156 = scmp.ne.s32.totalorder %s147, %s148
      %p157 = scmp.eq.s32.totalorder %s29, 0
      %p158 = por %p156, %p157
      %p159 = scmp.ne.s32.totalorder %s147, %s148
      %p160 = scmp.eq.s32.totalorder %s30, 3
      %p161 = por %p159, %p160
      %p163 = scmp.ne.s32.totalorder %s148, %s162
      %p164 = scmp.eq.s32.totalorder %s30, 0
      %p165 = por %p163, %p164
      %s167 = sadd.s32 %s166, 1
      %p170 = scmp.eq.s32.totalorder %s24, 3
      %p171 = scmp.ne.s32.totalorder %s166, %s168
      %p172 = scmp.eq.s32.totalorder %s24, 0
      %p173 = por %p171, %p172
      %p174 = scmp.ne.s32.totalorder %s166, %s168
      %p175 = scmp.eq.s32.totalorder %s29, 3
      %p176 = por %p174, %p175
      %p177 = scmp.ne.s32.totalorder %s168, %s169
      %p178 = scmp.eq.s32.totalorder %s29, 0
      %p179 = por %p177, %p178
      %p180 = scmp.ne.s32.totalorder %s168, %s169
      %p181 = scmp.eq.s32.totalorder %s30, 3
      %p182 = por %p180, %p181
      %p184 = scmp.ne.s32.totalorder %s169, %s183
      %p185 = scmp.eq.s32.totalorder %s30, 0
      %p186 = por %p184, %p185
      %s188 = sadd.s32 %s187, 1
      %p191 = scmp.eq.s32.totalorder %s24, 3
      %p192 = scmp.ne.s32.totalorder %s187, %s189
      %p193 = scmp.eq.s32.totalorder %s24, 0
      %p194 = por %p192, %p193
      %p195 = scmp.ne.s32.totalorder %s187, %s189
      %p196 = scmp.eq.s32.totalorder %s29, 3
      %p197 = por %p195, %p196
      %p198 = scmp.ne.s32.totalorder %s189, %s190
      %p199 = scmp.eq.s32.totalorder %s29, 0
      %p200 = por %p198, %p199
      %p201 = scmp.ne.s32.totalorder %s189, %s190
      %p202 = scmp.eq.s32.totalorder %s30, 3
      %p203 = por %p201, %p202
      %p205 = scmp.ne.s32.totalorder %s190, %s204
      %p206 = scmp.eq.s32.totalorder %s30, 0
      %p207 = por %p205, %p206
      %s209 = sadd.s32 %s208, 1
      %p212 = scmp.eq.s32.totalorder %s24, 3
      %p213 = scmp.ne.s32.totalorder %s208, %s210
      %p214 = scmp.eq.s32.totalorder %s24, 0
      %p215 = por %p213, %p214
      %p216 = scmp.ne.s32.totalorder %s208, %s210
      %p217 = scmp.eq.s32.totalorder %s29, 3
      %p218 = por %p216, %p217
      %p219 = scmp.ne.s32.totalorder %s210, %s211
      %p220 = scmp.eq.s32.totalorder %s29, 0
      %p221 = por %p219, %p220
      %p222 = scmp.ne.s32.totalorder %s210, %s211
      %p223 = scmp.eq.s32.totalorder %s30, 3
      %p224 = por %p222, %p223
      %p226 = scmp.ne.s32.totalorder %s211, %s225
      %p227 = scmp.eq.s32.totalorder %s30, 0
      %p228 = por %p226, %p227
      %s230 = sadd.s32 %s229, 1
      %p233 = scmp.eq.s32.totalorder %s24, 3
      %p234 = scmp.ne.s32.totalorder %s229, %s231
      %p235 = scmp.eq.s32.totalorder %s24, 0
      %p236 = por %p234, %p235
      %p237 = scmp.ne.s32.totalorder %s229, %s231
      %p238 = scmp.eq.s32.totalorder %s29, 3
      %p239 = por %p237, %p238
      %p240 = scmp.ne.s32.totalorder %s231, %s232
      %p241 = scmp.eq.s32.totalorder %s29, 0
      %p242 = por %p240, %p241
      %p243 = scmp.ne.s32.totalorder %s231, %s232
      %p244 = scmp.eq.s32.totalorder %s30, 3
      %p245 = por %p243, %p244
      %p247 = scmp.ne.s32.totalorder %s232, %s246
      %p248 = scmp.eq.s32.totalorder %s30, 0
      %p249 = por %p247, %p248
      %s250 = ssub.s32 %s31, %s43
      %s251 = ssub.s32 %s32, %s39
      %s252 = sor.u32 %s250, %s251
      %p253 = scmp.eq.s32.totalorder %s252, 0
      %s255 = sadd.s32 %s254, 1
      %s256 = scalar_select %p253, %s254, %s255
      %p259 = pneg %p253
      %p260 = scmp.eq.s32.totalorder %s24, 3
      %p261 = por %p259, %p260
      %p262 = scmp.ne.s32.totalorder %s254, %s257
      %p263 = scmp.eq.s32.totalorder %s24, 0
      %p264 = por %p262, %p263
      %p265 = scmp.ne.s32.totalorder %s254, %s257
      %p266 = scmp.eq.s32.totalorder %s29, 3
      %p267 = por %p265, %p266
      %p268 = scmp.ne.s32.totalorder %s257, %s258
      %p269 = scmp.eq.s32.totalorder %s29, 0
      %p270 = por %p268, %p269
      %p271 = scmp.ne.s32.totalorder %s257, %s258
      %p272 = scmp.eq.s32.totalorder %s30, 3
      %p273 = por %p271, %p272
      %p275 = scmp.ne.s32.totalorder %s258, %s274
      %p276 = scmp.eq.s32.totalorder %s30, 0
      %p277 = por %p275, %p276
      %p278 = scmp.le.s32.totalorder 1, %s24
      %p279 = scmp.lt.s32.totalorder %s24, 5
      %p280 = pnand %p278, %p279
      %p281 = pneg %p280
      // Predicated region
      $region9: #{tpu_custom_call.1} parent=5 // pred_check
        _
      $region10: #{tpu_custom_call.1} parent=5 // pred_check_branch
        %283 = sbr.rel (%p280) target = $region12
      $region11: #{tpu_custom_call.1} parent=5 // pred_region
        %s284 = ssub.s32 %s24, 1
        // Predicated region
        $region13: #{tpu_custom_call.1} parent=11 // pred_check
          %p285 = pneg %p137
        $region14: #{tpu_custom_call.1} parent=11 // pred_check_branch
          %287 = sbr.rel (%p285) target = $region16
        $region15: #{tpu_custom_call.1} parent=11 // pred_region
          _
        $region16: #{tpu_custom_call.1} parent=11 // pred_fallthru
          _
        // Predicated region
        $region17: #{tpu_custom_call.1} parent=11 // pred_check
          %p288 = pneg %p158
        $region18: #{tpu_custom_call.1} parent=11 // pred_check_branch
          %290 = sbr.rel (%p288) target = $region20
        $region19: #{tpu_custom_call.1} parent=11 // pred_region
          _
        $region20: #{tpu_custom_call.1} parent=11 // pred_fallthru
          _
        // Predicated region
        $region21: #{tpu_custom_call.1} parent=11 // pred_check
          %p291 = pneg %p179
        $region22: #{tpu_custom_call.1} parent=11 // pred_check_branch
          %293 = sbr.rel (%p291) target = $region24
        $region23: #{tpu_custom_call.1} parent=11 // pred_region
          %s295 = ssub.s32 256, 256
          %296 = vsyncadd [#allocation6], %s295
          %s297 = sshll.u32 [#allocation7], 4
          %s298 = int_to_ptr.vmem [resolvable:$true] %s297
          %303 = dma.hbm_to_vmem [thread:$0]  %s5, 256, %s298, [#allocation6], 128, 128, 8
        $region24: #{tpu_custom_call.1} parent=11 // pred_fallthru
          _
        // Predicated region
        $region25: #{tpu_custom_call.1} parent=11 // pred_check
          %p304 = pneg %p200
        $region26: #{tpu_custom_call.1} parent=11 // pred_check_branch
          %306 = sbr.rel (%p304) target = $region28
        $region27: #{tpu_custom_call.1} parent=11 // pred_region
          _
        $region28: #{tpu_custom_call.1} parent=11 // pred_fallthru
          _
        // Predicated region
        $region29: #{tpu_custom_call.1} parent=11 // pred_check
          %p307 = pneg %p221
        $region30: #{tpu_custom_call.1} parent=11 // pred_check_branch
          %309 = sbr.rel (%p307) target = $region32
        $region31: #{tpu_custom_call.1} parent=11 // pred_region
          _
        $region32: #{tpu_custom_call.1} parent=11 // pred_fallthru
          _
        // Predicated region
        $region33: #{tpu_custom_call.1} parent=11 // pred_check
          %p310 = pneg %p242
        $region34: #{tpu_custom_call.1} parent=11 // pred_check_branch
          %312 = sbr.rel (%p310) target = $region36
        $region35: #{tpu_custom_call.1} parent=11 // pred_region
          _
        $region36: #{tpu_custom_call.1} parent=11 // pred_fallthru
          _
      $region12: #{tpu_custom_call.1} parent=5 // pred_fallthru
        _
      %p313 = scmp.lt.s32.totalorder %s24, 4
      // Predicated region
      $region37: #{tpu_custom_call.1} parent=5 // pred_check
        %p314 = pneg %p313
      $region38: #{tpu_custom_call.1} parent=5 // pred_check_branch
        %316 = sbr.rel (%p314) target = $region40
      $region39: #{tpu_custom_call.1} parent=5 // pred_region
        // Predicated region
        $region41: #{tpu_custom_call.1} parent=39 // pred_check
          %p317 = pneg %p56
        $region42: #{tpu_custom_call.1} parent=39 // pred_check_branch
          %319 = sbr.rel (%p317) target = $region44
        $region43: #{tpu_custom_call.1} parent=39 // pred_region
          %s320 = sand.u32 %s46, 1
          %s321 = scalar_lea.sflag [#allocation3], %s320
          %s322 = sand.u32 %s46, 1
          %s323 = smul.addr %s322, 8
          %s324 = scalar_lea.vmem [#allocation2], %s323
          %s326 = ssub.s32 128, 128
          %327 = vsyncadd %s321, %s326
          %s328 = smul.addr %s31, 128
          %s329 = scalar_lea.hbm %s0, %s328
          %s331 = sshll.u32 %s324, 4
          %s332 = int_to_ptr.vmem [resolvable:$true] %s331
          %334 = dma.hbm_to_vmem [thread:$0]  %s329, 128, %s332, %s321
        $region44: #{tpu_custom_call.1} parent=39 // pred_fallthru
          _
        // Predicated region
        $region45: #{tpu_custom_call.1} parent=39 // pred_check
          %p335 = pneg %p82
        $region46: #{tpu_custom_call.1} parent=39 // pred_check_branch
          %337 = sbr.rel (%p335) target = $region48
        $region47: #{tpu_custom_call.1} parent=39 // pred_region
          %p338 = scmp.lt.s32.totalorder %s31, 1
          %s339 = scalar_select %p338, %s31, 1
          %s340 = smul.addr %s339, 8
          %s341 = scalar_lea.vmem %s1, %s340
        $region48: #{tpu_custom_call.1} parent=39 // pred_fallthru
          _
        // Predicated region
        $region49: #{tpu_custom_call.1} parent=39 // pred_check
          %p342 = pneg %p110
        $region50: #{tpu_custom_call.1} parent=39 // pred_check_branch
          %344 = sbr.rel (%p342) target = $region52
        $region51: #{tpu_custom_call.1} parent=39 // pred_region
          %s345 = sand.u32 %s24, 1
          %s346 = scalar_lea.sflag [#allocation6], %s345
          %s347 = sand.u32 %s100, 1
          %s348 = smul.addr %s347, 64
          %s349 = scalar_lea.vmem [#allocation5], %s348
          %s350 = smul.u32 8, %s31
          %s352 = ssub.s32 1024, 1024
          %353 = vsyncadd %s346, %s352
          %s354 = smul.addr %s350, 2
          %s355 = sadd.s32 %s32, %s354
          %s356 = smul.addr %s355, 128
          %s357 = scalar_lea.hbm %s2, %s356
          %s358 = sshll.u32 %s349, 4
          %s359 = int_to_ptr.vmem [resolvable:$true] %s358
          %364 = dma.hbm_to_vmem [thread:$0]  %s357, 1024, %s359, %s346, 256, 128, 8
        $region52: #{tpu_custom_call.1} parent=39 // pred_fallthru
          _
      $region40: #{tpu_custom_call.1} parent=5 // pred_fallthru
        _
      %p365 = scmp.le.s32.totalorder 1, %s24
      %p366 = scmp.lt.s32.totalorder %s24, 5
      %p367 = pnand %p365, %p366
      %p368 = pneg %p367
      // Predicated region
      $region53: #{tpu_custom_call.1} parent=5 // pred_check
        _
      $region54: #{tpu_custom_call.1} parent=5 // pred_check_branch
        %370 = sbr.rel (%p367) target = $region56
      $region55: #{tpu_custom_call.1} parent=5 // pred_region
        %s371 = ssub.s32 %s24, 1
        %s372 = sand.u32 %s49, 1
        %s373 = scalar_lea.sflag [#allocation3], %s372
        %s374 = sand.u32 %s49, 1
        %s375 = smul.addr %s374, 8
        %s376 = scalar_lea.vmem [#allocation2], %s375
        // Predicated region
        $region57: #{tpu_custom_call.1} parent=55 // pred_check
          %p377 = pneg %p62
        $region58: #{tpu_custom_call.1} parent=55 // pred_check_branch
          %379 = sbr.rel (%p377) target = $region60
        $region59: #{tpu_custom_call.1} parent=55 // pred_region
          %380 = dma.done %s373, 128
        $region60: #{tpu_custom_call.1} parent=55 // pred_fallthru
          _
        %s381 = sand.u32 %s29, 1
        %s382 = scalar_lea.sflag [#allocation6], %s381
        %s383 = sand.u32 %s103, 1
        %s384 = smul.addr %s383, 64
        %s385 = scalar_lea.vmem [#allocation5], %s384
        // Predicated region
        $region61: #{tpu_custom_call.1} parent=55 // pred_check
          %p386 = pneg %p116
        $region62: #{tpu_custom_call.1} parent=55 // pred_check_branch
          %388 = sbr.rel (%p386) target = $region64
        $region63: #{tpu_custom_call.1} parent=55 // pred_region
          %389 = dma.done %s382, 1024
        $region64: #{tpu_custom_call.1} parent=55 // pred_fallthru
          _
        // Predicated region
        $region65: #{tpu_custom_call.1} parent=55 // pred_check
          %p390 = pneg %p179
        $region66: #{tpu_custom_call.1} parent=55 // pred_check_branch
          %392 = sbr.rel (%p390) target = $region68
        $region67: #{tpu_custom_call.1} parent=55 // pred_region
          %393 = dma.done [#allocation6], 256
        $region68: #{tpu_custom_call.1} parent=55 // pred_fallthru
          _
        %s394 = sand.u32 %s49, 1
        %s395 = scalar_lea.sflag [#allocation3], %s394
        %s396 = sand.u32 %s49, 1
        %s397 = smul.addr %s396, 8
        %s398 = scalar_lea.vmem [#allocation2], %s397
        %p399 = pneg %p62
        %p400 = pneg %p59
        %p401 = scmp.lt.s32.totalorder %s33, 1
        %s402 = scalar_select %p401, %s33, 1
        %s403 = smul.addr %s402, 8
        %s404 = scalar_lea.vmem %s1, %s403
        %p405 = pneg %p88
        %p406 = pneg %p85
        %s407 = sand.u32 %s29, 1
        %s408 = scalar_lea.sflag [#allocation6], %s407
        %s409 = sand.u32 %s103, 1
        %s410 = smul.addr %s409, 64
        %s411 = scalar_lea.vmem [#allocation5], %s410
        %p412 = pneg %p116
        %p413 = pneg %p113
        %p414 = pneg %p137
        %p415 = pneg %p134
        %p416 = pneg %p158
        %p417 = pneg %p155
        %p418 = pneg %p179
        %p419 = pneg %p176
        %p420 = pneg %p200
        %p421 = pneg %p197
        %p422 = pneg %p221
        %p423 = pneg %p218
        %p424 = pneg %p242
        %p425 = pneg %p239
        %p426 = pneg %p270
        %p427 = pneg %p267
        %s428 = sand.u32 %s257, 1
        %s429 = scalar_lea.sflag [#allocation4], %s428
        %s430 = sand.u32 %s257, 1
        %s431 = smul.addr %s430, 64
        %s432 = scalar_lea.vmem [#allocation8], %s431
        %p433 = scmp.lt.s32.totalorder %s33, 1
        %s434 = scalar_select %p433, %s33, 1
        %s435 = smul.addr %s434, 8
        %s436 = scalar_lea.vmem %s1, %s435
        %s437 = smul.u32 8, %s33
        %s438 = smul.u32 8, %s33
        %v439 = vld [vmem:[%s376] sm:$0xff]
        %v440 = vld [vmem:[#allocation7] sm:$0xff]
        %v441 = vld [vmem:[#allocation7 + $0x8] sm:$0xff]
        %v442 = vld [vmem:[%s6] sm:$0x1]
        %v444 = vlaneseq
        %v445 = vshrl.u32 %v444, 7
        %v446 = vsub.s32 0, %v445
        %v447 = vrot.slane %v442, %v446
        %vm449 = vcmask 130048
        %v451 = vsel %vm449, %v439, 0
        %453 = vmatprep.subr.mxu0 0.0
        %454 = vmatpush1.msra.mxu0 %v440
        %455 = vmatprep.subr.mxu0 0.0
        %456 = vmatpush1.msra.mxu0 %v441
        %457 = vmatprep.subr.mxu0 0.0
        %458 = vmatpush1.msra.mxu0 0.0
        %459 = vmatprep.subr.mxu0 0.0
        %460 = vmatpush1.msra.mxu0 0.0
        %461 = vmatprep.subr.mxu0 0.0
        %462 = vmatpush1.msra.mxu0 0.0
        %463 = vmatprep.subr.mxu0 0.0
        %464 = vmatpush1.msra.mxu0 0.0
        %465 = vmatprep.subr.mxu0 0.0
        %466 = vmatpush1.msra.mxu0 0.0
        %467 = vmatprep.subr.mxu0 0.0
        %468 = vmatpush1.msra.mxu0 0.0
        %469 = vmatprep.subr.mxu0 0.0
        %470 = vmatpush1.msra.mxu0 0.0
        %471 = vmatprep.subr.mxu0 0.0
        %472 = vmatpush1.msra.mxu0 0.0
        %473 = vmatprep.subr.mxu0 0.0
        %474 = vmatpush1.msra.mxu0 0.0
        %475 = vmatprep.subr.mxu0 0.0
        %476 = vmatpush1.msra.mxu0 0.0
        %477 = vmatprep.subr.mxu0 0.0
        %478 = vmatpush1.msra.mxu0 0.0
        %479 = vmatprep.subr.mxu0 0.0
        %480 = vmatpush1.msra.mxu0 0.0
        %481 = vmatprep.subr.mxu0 0.0
        %482 = vmatpush1.msra.mxu0 0.0
        %483 = vmatprep.subr.mxu0 0.0
        %484 = vmatpush1.msra.mxu0 0.0
        %485 = vmatprep.subr.mxu0 0.0
        %486 = vmatpush1.msra.mxu0 0.0
        %487 = vmatprep.subr.mxu0 0.0
        %488 = vmatpush1.msra.mxu0 0.0
        %489 = vmatprep.subr.mxu0 0.0
        %490 = vmatpush1.msra.mxu0 0.0
        %491 = vmatprep.subr.mxu0 0.0
        %492 = vmatpush1.msra.mxu0 0.0
        %493 = vmatprep.subr.mxu0 0.0
        %494 = vmatpush1.msra.mxu0 0.0
        %495 = vmatprep.subr.mxu0 0.0
        %496 = vmatpush1.msra.mxu0 0.0
        %497 = vmatprep.subr.mxu0 0.0
        %498 = vmatpush1.msra.mxu0 0.0
        %499 = vmatprep.subr.mxu0 0.0
        %500 = vmatpush1.msra.mxu0 0.0
        %501 = vmatprep.subr.mxu0 0.0
        %502 = vmatpush1.msra.mxu0 0.0
        %503 = vmatprep.subr.mxu0 0.0
        %504 = vmatpush1.msra.mxu0 0.0
        %505 = vmatprep.subr.mxu0 0.0
        %506 = vmatpush1.msra.mxu0 0.0
        %507 = vmatprep.subr.mxu0 0.0
        %508 = vmatpush1.msra.mxu0 0.0
        %509 = vmatprep.subr.mxu0 0.0
        %510 = vmatpush1.msra.mxu0 0.0
        %511 = vmatprep.subr.mxu0 0.0
        %512 = vmatpush1.msra.mxu0 0.0
        %513 = vmatprep.subr.mxu0 0.0
        %514 = vmatpush1.msra.mxu0 0.0
        %515 = vmatprep.subr.mxu0 0.0
        %516 = vmatpush1.msra.mxu0 0.0
        %517 = vmatprep.mubr.f32.mxu0 0.0
        %518 = vmatmul.mubr.f32.gmra.mrb[0].mxu0 %v451
        %v519 = vpop.f32.mrb[0].mxu0
        %v520 = vadd.f32 %v447, %v519
        %v521 = vpop.f32.mrb[0].mxu0
        %522 = vdwg.mxu0
        %v523 = vld [vmem:[%s436] sm:$0xff]
        %v524 = vld [vmem:[%s7] sm:$0xff]
        %v525 = vld [vmem:[%s8] sm:$0x1]
        %v527 = vlaneseq
        %v528 = vshrl.u32 %v527, 7
        %v529 = vsub.s32 0, %v528
        %v530 = vrot.slane %v525, %v529
        %vm532 = vcmask 64512
        %v534 = vsel %vm532, %v523, 0
        %536 = vmatprep.subr.mxu0 0.0
        %537 = vmatpush1.msra.mxu0 %v524
        %538 = vmatprep.subr.mxu0 0.0
        %539 = vmatpush1.msra.mxu0 0.0
        %540 = vmatprep.subr.mxu0 0.0
        %541 = vmatpush1.msra.mxu0 0.0
        %542 = vmatprep.subr.mxu0 0.0
        %543 = vmatpush1.msra.mxu0 0.0
        %544 = vmatprep.subr.mxu0 0.0
        %545 = vmatpush1.msra.mxu0 0.0
        %546 = vmatprep.subr.mxu0 0.0
        %547 = vmatpush1.msra.mxu0 0.0
        %548 = vmatprep.subr.mxu0 0.0
        %549 = vmatpush1.msra.mxu0 0.0
        %550 = vmatprep.subr.mxu0 0.0
        %551 = vmatpush1.msra.mxu0 0.0
        %552 = vmatprep.subr.mxu0 0.0
        %553 = vmatpush1.msra.mxu0 0.0
        %554 = vmatprep.subr.mxu0 0.0
        %555 = vmatpush1.msra.mxu0 0.0
        %556 = vmatprep.subr.mxu0 0.0
        %557 = vmatpush1.msra.mxu0 0.0
        %558 = vmatprep.subr.mxu0 0.0
        %559 = vmatpush1.msra.mxu0 0.0
        %560 = vmatprep.subr.mxu0 0.0
        %561 = vmatpush1.msra.mxu0 0.0
        %562 = vmatprep.subr.mxu0 0.0
        %563 = vmatpush1.msra.mxu0 0.0
        %564 = vmatprep.subr.mxu0 0.0
        %565 = vmatpush1.msra.mxu0 0.0
        %566 = vmatprep.subr.mxu0 0.0
        %567 = vmatpush1.msra.mxu0 0.0
        %568 = vmatprep.subr.mxu0 0.0
        %569 = vmatpush1.msra.mxu0 0.0
        %570 = vmatprep.subr.mxu0 0.0
        %571 = vmatpush1.msra.mxu0 0.0
        %572 = vmatprep.subr.mxu0 0.0
        %573 = vmatpush1.msra.mxu0 0.0
        %574 = vmatprep.subr.mxu0 0.0
        %575 = vmatpush1.msra.mxu0 0.0
        %576 = vmatprep.subr.mxu0 0.0
        %577 = vmatpush1.msra.mxu0 0.0
        %578 = vmatprep.subr.mxu0 0.0
        %579 = vmatpush1.msra.mxu0 0.0
        %580 = vmatprep.subr.mxu0 0.0
        %581 = vmatpush1.msra.mxu0 0.0
        %582 = vmatprep.subr.mxu0 0.0
        %583 = vmatpush1.msra.mxu0 0.0
        %584 = vmatprep.subr.mxu0 0.0
        %585 = vmatpush1.msra.mxu0 0.0
        %586 = vmatprep.subr.mxu0 0.0
        %587 = vmatpush1.msra.mxu0 0.0
        %588 = vmatprep.subr.mxu0 0.0
        %589 = vmatpush1.msra.mxu0 0.0
        %590 = vmatprep.subr.mxu0 0.0
        %591 = vmatpush1.msra.mxu0 0.0
        %592 = vmatprep.subr.mxu0 0.0
        %593 = vmatpush1.msra.mxu0 0.0
        %594 = vmatprep.subr.mxu0 0.0
        %595 = vmatpush1.msra.mxu0 0.0
        %596 = vmatprep.subr.mxu0 0.0
        %597 = vmatpush1.msra.mxu0 0.0
        %598 = vmatprep.subr.mxu0 0.0
        %599 = vmatpush1.msra.mxu0 0.0
        %600 = vmatprep.mubr.f32.mxu0 0.0
        %601 = vmatmul.mubr.f32.gmra.mrb[0].mxu0 %v534
        %v602 = vpop.f32.mrb[0].mxu0
        %v603 = vadd.f32 %v530, %v602
        %v604 = vpop.f32.mrb[0].mxu0
        %605 = vdwg.mxu0
        %v606 = vxor.u32 %v520, 2147483648
        %v607 = vmul.f32 %v606, 1.442695
        %v608 = vpow.pop %v607
        %v609 = vadd.f32 %v608, 1.0
        %v610 = vrcp.pop %v609
        %v611 = vmul.f32 1.0, %v610
        %v612 = vxor.u32 %v603, 2147483648
        %v613 = vmul.f32 %v612, 1.442695
        %v614 = vpow.pop %v613
        %v615 = vadd.f32 %v614, 1.0
        %v616 = vrcp.pop %v615
        %v617 = vmul.f32 1.0, %v616
        %v618 = vmul.f32 %v611, %v617
        %v619 = vadd.f32 %v520, %v603
        %v620 = vld [vmem:[%s385] sm:$0xff]
        %v621 = vld [vmem:[%s385 + $0x8] sm:$0xff]
        %v622 = vld [vmem:[%s385 + $0x10] sm:$0xff]
        %v623 = vld [vmem:[%s385 + $0x18] sm:$0xff]
        %v624 = vld [vmem:[%s385 + $0x20] sm:$0xff]
        %v625 = vld [vmem:[%s385 + $0x28] sm:$0xff]
        %v626 = vld [vmem:[%s385 + $0x30] sm:$0xff]
        %v627 = vld [vmem:[%s385 + $0x38] sm:$0xff]
        %v628 = vld [vmem:[%s3] sm:$0xff]
        %v629 = vld [vmem:[%s3 + $0x8] sm:$0xff]
        %v630 = vld [vmem:[%s3 + $0x10] sm:$0xff]
        %v631 = vld [vmem:[%s3 + $0x18] sm:$0xff]
        %v632 = vld [vmem:[%s4] sm:$0x1]
        %v634 = vlaneseq
        %v635 = vshrl.u32 %v634, 7
        %v636 = vsub.s32 0, %v635
        %v637 = vrot.slane %v632, %v636
        %vm639 = vcmask 261120
        %v641 = vsel %vm639, %v620, 0
        %v644 = vsel %vm639, %v621, 0
        %v647 = vsel %vm639, %v622, 0
        %v650 = vsel %vm639, %v623, 0
        %v653 = vsel %vm639, %v624, 0
        %v656 = vsel %vm639, %v625, 0
        %v659 = vsel %vm639, %v626, 0
        %v662 = vsel %vm639, %v627, 0
        %664 = vmatprep.subr.mxu0 0.0
        %665 = vmatpush1.msra.mxu0 %v628
        %666 = vmatprep.subr.mxu0 0.0
        %667 = vmatpush1.msra.mxu0 %v629
        %668 = vmatprep.subr.mxu0 0.0
        %669 = vmatpush1.msra.mxu0 %v630
        %670 = vmatprep.subr.mxu0 0.0
        %671 = vmatpush1.msra.mxu0 %v631
        %672 = vmatprep.subr.mxu0 0.0
        %673 = vmatpush1.msra.mxu0 0.0
        %674 = vmatprep.subr.mxu0 0.0
        %675 = vmatpush1.msra.mxu0 0.0
        %676 = vmatprep.subr.mxu0 0.0
        %677 = vmatpush1.msra.mxu0 0.0
        %678 = vmatprep.subr.mxu0 0.0
        %679 = vmatpush1.msra.mxu0 0.0
        %680 = vmatprep.subr.mxu0 0.0
        %681 = vmatpush1.msra.mxu0 0.0
        %682 = vmatprep.subr.mxu0 0.0
        %683 = vmatpush1.msra.mxu0 0.0
        %684 = vmatprep.subr.mxu0 0.0
        %685 = vmatpush1.msra.mxu0 0.0
        %686 = vmatprep.subr.mxu0 0.0
        %687 = vmatpush1.msra.mxu0 0.0
        %688 = vmatprep.subr.mxu0 0.0
        %689 = vmatpush1.msra.mxu0 0.0
        %690 = vmatprep.subr.mxu0 0.0
        %691 = vmatpush1.msra.mxu0 0.0
        %692 = vmatprep.subr.mxu0 0.0
        %693 = vmatpush1.msra.mxu0 0.0
        %694 = vmatprep.subr.mxu0 0.0
        %695 = vmatpush1.msra.mxu0 0.0
        %696 = vmatprep.subr.mxu0 0.0
        %697 = vmatpush1.msra.mxu0 0.0
        %698 = vmatprep.subr.mxu0 0.0
        %699 = vmatpush1.msra.mxu0 0.0
        %700 = vmatprep.subr.mxu0 0.0
        %701 = vmatpush1.msra.mxu0 0.0
        %702 = vmatprep.subr.mxu0 0.0
        %703 = vmatpush1.msra.mxu0 0.0
        %704 = vmatprep.subr.mxu0 0.0
        %705 = vmatpush1.msra.mxu0 0.0
        %706 = vmatprep.subr.mxu0 0.0
        %707 = vmatpush1.msra.mxu0 0.0
        %708 = vmatprep.subr.mxu0 0.0
        %709 = vmatpush1.msra.mxu0 0.0
        %710 = vmatprep.subr.mxu0 0.0
        %711 = vmatpush1.msra.mxu0 0.0
        %712 = vmatprep.subr.mxu0 0.0
        %713 = vmatpush1.msra.mxu0 0.0
        %714 = vmatprep.subr.mxu0 0.0
        %715 = vmatpush1.msra.mxu0 0.0
        %716 = vmatprep.subr.mxu0 0.0
        %717 = vmatpush1.msra.mxu0 0.0
        %718 = vmatprep.subr.mxu0 0.0
        %719 = vmatpush1.msra.mxu0 0.0
        %720 = vmatprep.subr.mxu0 0.0
        %721 = vmatpush1.msra.mxu0 0.0
        %722 = vmatprep.subr.mxu0 0.0
        %723 = vmatpush1.msra.mxu0 0.0
        %724 = vmatprep.subr.mxu0 0.0
        %725 = vmatpush1.msra.mxu0 0.0
        %726 = vmatprep.subr.mxu0 0.0
        %727 = vmatpush1.msra.mxu0 0.0
        %728 = vmatprep.mubr.f32.mxu0 0.0
        %729 = vmatmul.mubr.f32.gmra.mrb[0].mxu0 %v641
        %v730 = vpop.f32.mrb[0].mxu0
        %v731 = vadd.f32 %v637, %v730
        %v732 = vpop.f32.mrb[0].mxu0
        %733 = vmatprep.mubr.f32.mxu0 0.0
        %734 = vmatmul.mubr.f32.gmra.mrb[0].mxu0 %v644
        %v735 = vpop.f32.mrb[0].mxu0
        %v736 = vadd.f32 %v637, %v735
        %v737 = vpop.f32.mrb[0].mxu0
        %738 = vmatprep.mubr.f32.mxu0 0.0
        %739 = vmatmul.mubr.f32.gmra.mrb[0].mxu0 %v647
        %v740 = vpop.f32.mrb[0].mxu0
        %v741 = vadd.f32 %v637, %v740
        %v742 = vpop.f32.mrb[0].mxu0
        %743 = vmatprep.mubr.f32.mxu0 0.0
        %744 = vmatmul.mubr.f32.gmra.mrb[0].mxu0 %v650
        %v745 = vpop.f32.mrb[0].mxu0
        %v746 = vadd.f32 %v637, %v745
        %v747 = vpop.f32.mrb[0].mxu0
        %748 = vmatprep.mubr.f32.mxu0 0.0
        %749 = vmatmul.mubr.f32.gmra.mrb[0].mxu0 %v653
        %v750 = vpop.f32.mrb[0].mxu0
        %v751 = vadd.f32 %v637, %v750
        %v752 = vpop.f32.mrb[0].mxu0
        %753 = vmatprep.mubr.f32.mxu0 0.0
        %754 = vmatmul.mubr.f32.gmra.mrb[0].mxu0 %v656
        %v755 = vpop.f32.mrb[0].mxu0
        %v756 = vadd.f32 %v637, %v755
        %v757 = vpop.f32.mrb[0].mxu0
        %758 = vmatprep.mubr.f32.mxu0 0.0
        %759 = vmatmul.mubr.f32.gmra.mrb[0].mxu0 %v659
        %v760 = vpop.f32.mrb[0].mxu0
        %v761 = vadd.f32 %v637, %v760
        %v762 = vpop.f32.mrb[0].mxu0
        %763 = vmatprep.mubr.f32.mxu0 0.0
        %764 = vmatmul.mubr.f32.gmra.mrb[0].mxu0 %v662
        %v765 = vpop.f32.mrb[0].mxu0
        %v766 = vadd.f32 %v637, %v765
        %v767 = vpop.f32.mrb[0].mxu0
        %768 = vdwg.mxu0
        %v770 = vcombine.high %v618, %v618
        %v772 = vunpack.c.l.s4 1966171168
        %v773 = vunpack.c.0.s8 %v772
        %v774 = vlaneseq
        %v775 = vshrl.u32 %v774, 7
        %v776 = vsub.s32 %v773, %v775
        %v777 = vrot.slane %v618, %v776
        %v779 = vunpack.c.l.s4 1966171168
        %v780 = vunpack.c.0.s8 %v779
        %v781 = vlaneseq
        %v782 = vshrl.u32 %v781, 7
        %v783 = vsub.s32 %v780, %v782
        %v784 = vrot.slane %v770, %v783
        %v785 = vcombine.high %v777, %v777
        %v786 = vcombine.high %v784, %v784
        %v788 = vunpack.c.l.s4 1966171168
        %v789 = vunpack.c.0.s8 %v788
        %v790 = vlaneseq
        %v791 = vshrl.u32 %v790, 7
        %v792 = vsub.s32 %v789, %v791
        %v793 = vrot.slane %v777, %v792
        %v795 = vunpack.c.l.s4 1966171168
        %v796 = vunpack.c.0.s8 %v795
        %v797 = vlaneseq
        %v798 = vshrl.u32 %v797, 7
        %v799 = vsub.s32 %v796, %v798
        %v800 = vrot.slane %v784, %v799
        %v802 = vunpack.c.l.s4 1966171168
        %v803 = vunpack.c.0.s8 %v802
        %v804 = vlaneseq
        %v805 = vshrl.u32 %v804, 7
        %v806 = vsub.s32 %v803, %v805
        %v807 = vrot.slane %v785, %v806
        %v809 = vunpack.c.l.s4 1966171168
        %v810 = vunpack.c.0.s8 %v809
        %v811 = vlaneseq
        %v812 = vshrl.u32 %v811, 7
        %v813 = vsub.s32 %v810, %v812
        %v814 = vrot.slane %v786, %v813
        %v815 = vcombine.high %v793, %v793
        %v816 = vcombine.high %v800, %v800
        %v817 = vcombine.high %v807, %v807
        %v818 = vcombine.high %v814, %v814
        %v819 = vlaneseq
        %v820 = vshrl.u32 %v819, 7
        %v821 = vsub.s32 0, %v820
        %v822 = vrot.slane %v793, %v821
        %v823 = vlaneseq
        %v824 = vshrl.u32 %v823, 7
        %v825 = vsub.s32 0, %v824
        %v826 = vrot.slane %v807, %v825
        %v827 = vlaneseq
        %v828 = vshrl.u32 %v827, 7
        %v829 = vsub.s32 0, %v828
        %v830 = vrot.slane %v815, %v829
        %v831 = vlaneseq
        %v832 = vshrl.u32 %v831, 7
        %v833 = vsub.s32 0, %v832
        %v834 = vrot.slane %v817, %v833
        %v835 = vlaneseq
        %v836 = vshrl.u32 %v835, 7
        %v837 = vsub.s32 0, %v836
        %v838 = vrot.slane %v800, %v837
        %v839 = vlaneseq
        %v840 = vshrl.u32 %v839, 7
        %v841 = vsub.s32 0, %v840
        %v842 = vrot.slane %v814, %v841
        %v843 = vlaneseq
        %v844 = vshrl.u32 %v843, 7
        %v845 = vsub.s32 0, %v844
        %v846 = vrot.slane %v816, %v845
        %v847 = vlaneseq
        %v848 = vshrl.u32 %v847, 7
        %v849 = vsub.s32 0, %v848
        %v850 = vrot.slane %v818, %v849
        %v859 = vmul.f32 %v731, %v822
        %v860 = vmul.f32 %v736, %v826
        %v861 = vmul.f32 %v741, %v830
        %v862 = vmul.f32 %v746, %v834
        %v863 = vmul.f32 %v751, %v838
        %v864 = vmul.f32 %v756, %v842
        %v865 = vmul.f32 %v761, %v846
        %v866 = vmul.f32 %v766, %v850
        %v868 = vcombine.high %v619, %v619
        %v870 = vunpack.c.l.s4 1966171168
        %v871 = vunpack.c.0.s8 %v870
        %v872 = vlaneseq
        %v873 = vshrl.u32 %v872, 7
        %v874 = vsub.s32 %v871, %v873
        %v875 = vrot.slane %v619, %v874
        %v877 = vunpack.c.l.s4 1966171168
        %v878 = vunpack.c.0.s8 %v877
        %v879 = vlaneseq
        %v880 = vshrl.u32 %v879, 7
        %v881 = vsub.s32 %v878, %v880
        %v882 = vrot.slane %v868, %v881
        %v883 = vcombine.high %v875, %v875
        %v884 = vcombine.high %v882, %v882
        %v886 = vunpack.c.l.s4 1966171168
        %v887 = vunpack.c.0.s8 %v886
        %v888 = vlaneseq
        %v889 = vshrl.u32 %v888, 7
        %v890 = vsub.s32 %v887, %v889
        %v891 = vrot.slane %v875, %v890
        %v893 = vunpack.c.l.s4 1966171168
        %v894 = vunpack.c.0.s8 %v893
        %v895 = vlaneseq
        %v896 = vshrl.u32 %v895, 7
        %v897 = vsub.s32 %v894, %v896
        %v898 = vrot.slane %v882, %v897
        %v900 = vunpack.c.l.s4 1966171168
        %v901 = vunpack.c.0.s8 %v900
        %v902 = vlaneseq
        %v903 = vshrl.u32 %v902, 7
        %v904 = vsub.s32 %v901, %v903
        %v905 = vrot.slane %v883, %v904
        %v907 = vunpack.c.l.s4 1966171168
        %v908 = vunpack.c.0.s8 %v907
        %v909 = vlaneseq
        %v910 = vshrl.u32 %v909, 7
        %v911 = vsub.s32 %v908, %v910
        %v912 = vrot.slane %v884, %v911
        %v913 = vcombine.high %v891, %v891
        %v914 = vcombine.high %v898, %v898
        %v915 = vcombine.high %v905, %v905
        %v916 = vcombine.high %v912, %v912
        %v917 = vlaneseq
        %v918 = vshrl.u32 %v917, 7
        %v919 = vsub.s32 0, %v918
        %v920 = vrot.slane %v891, %v919
        %v921 = vlaneseq
        %v922 = vshrl.u32 %v921, 7
        %v923 = vsub.s32 0, %v922
        %v924 = vrot.slane %v905, %v923
        %v925 = vlaneseq
        %v926 = vshrl.u32 %v925, 7
        %v927 = vsub.s32 0, %v926
        %v928 = vrot.slane %v913, %v927
        %v929 = vlaneseq
        %v930 = vshrl.u32 %v929, 7
        %v931 = vsub.s32 0, %v930
        %v932 = vrot.slane %v915, %v931
        %v933 = vlaneseq
        %v934 = vshrl.u32 %v933, 7
        %v935 = vsub.s32 0, %v934
        %v936 = vrot.slane %v898, %v935
        %v937 = vlaneseq
        %v938 = vshrl.u32 %v937, 7
        %v939 = vsub.s32 0, %v938
        %v940 = vrot.slane %v912, %v939
        %v941 = vlaneseq
        %v942 = vshrl.u32 %v941, 7
        %v943 = vsub.s32 0, %v942
        %v944 = vrot.slane %v914, %v943
        %v945 = vlaneseq
        %v946 = vshrl.u32 %v945, 7
        %v947 = vsub.s32 0, %v946
        %v948 = vrot.slane %v916, %v947
        %949 = vrot.lane.b32.xlu0 %v920, 96
        %v950 = vpop.permute.xlu0 %949
        %951 = vrot.lane.b32.xlu0 %v924, 96
        %v952 = vpop.permute.xlu0 %951
        %953 = vrot.lane.b32.xlu0 %v928, 96
        %v954 = vpop.permute.xlu0 %953
        %955 = vrot.lane.b32.xlu0 %v932, 96
        %v956 = vpop.permute.xlu0 %955
        %957 = vrot.lane.b32.xlu0 %v936, 96
        %v958 = vpop.permute.xlu0 %957
        %959 = vrot.lane.b32.xlu0 %v940, 96
        %v960 = vpop.permute.xlu0 %959
        %961 = vrot.lane.b32.xlu0 %v944, 96
        %v962 = vpop.permute.xlu0 %961
        %963 = vrot.lane.b32.xlu0 %v948, 96
        %v964 = vpop.permute.xlu0 %963
        %v973 = vadd.f32 %v859, %v950
        %v974 = vadd.f32 %v860, %v952
        %v975 = vadd.f32 %v861, %v954
        %v976 = vadd.f32 %v862, %v956
        %v977 = vadd.f32 %v863, %v958
        %v978 = vadd.f32 %v864, %v960
        %v979 = vadd.f32 %v865, %v962
        %v980 = vadd.f32 %v866, %v964
        %981 = vst.msk [vmem:[%s432] sm:$0xff] %vm639, %v973
        %982 = vst.msk [vmem:[%s432 + $0x8] sm:$0xff] %vm639, %v974
        %983 = vst.msk [vmem:[%s432 + $0x10] sm:$0xff] %vm639, %v975
        %984 = vst.msk [vmem:[%s432 + $0x18] sm:$0xff] %vm639, %v976
        %985 = vst.msk [vmem:[%s432 + $0x20] sm:$0xff] %vm639, %v977
        %986 = vst.msk [vmem:[%s432 + $0x28] sm:$0xff] %vm639, %v978
        %987 = vst.msk [vmem:[%s432 + $0x30] sm:$0xff] %vm639, %v979
        %988 = vst.msk [vmem:[%s432 + $0x38] sm:$0xff] %vm639, %v980
        %s989 = sand.u32 %s257, 1
        %s990 = scalar_lea.sflag [#allocation4], %s989
        %s991 = sand.u32 %s257, 1
        %s992 = smul.addr %s991, 64
        %s993 = scalar_lea.vmem [#allocation8], %s992
        // Predicated region
        $region69: #{tpu_custom_call.1} parent=55 // pred_check
          %p994 = pneg %p267
        $region70: #{tpu_custom_call.1} parent=55 // pred_check_branch
          %996 = sbr.rel (%p994) target = $region72
        $region71: #{tpu_custom_call.1} parent=55 // pred_region
          %s997 = smul.u32 8, %s33
          %s999 = ssub.s32 1024, 1024
          %1000 = vsyncadd %s990, %s999
          %s1001 = smul.addr %s997, 2
          %s1002 = sadd.s32 %s34, %s1001
          %s1003 = smul.addr %s1002, 128
          %s1004 = scalar_lea.hbm %s9, %s1003
          %s1005 = sshll.u32 %s993, 4
          %s1006 = int_to_ptr.vmem [resolvable:$true] %s1005
          %1011 = dma.vmem_to_hbm [thread:$0]  %s1006, 1024, %s1004, %s990, 128, 256, 8
        $region72: #{tpu_custom_call.1} parent=55 // pred_fallthru
          _
      $region56: #{tpu_custom_call.1} parent=5 // pred_fallthru
        _
      %p1012 = scmp.le.s32.totalorder 2, %s24
      // Predicated region
      $region73: #{tpu_custom_call.1} parent=5 // pred_check
        %p1013 = pneg %p1012
      $region74: #{tpu_custom_call.1} parent=5 // pred_check_branch
        %1015 = sbr.rel (%p1013) target = $region76
      $region75: #{tpu_custom_call.1} parent=5 // pred_region
        %s1016 = ssub.s32 %s24, 2
        // Predicated region
        $region77: #{tpu_custom_call.1} parent=75 // pred_check
          %p1017 = pneg %p273
        $region78: #{tpu_custom_call.1} parent=75 // pred_check_branch
          %1019 = sbr.rel (%p1017) target = $region80
        $region79: #{tpu_custom_call.1} parent=75 // pred_region
          %s1020 = sand.u32 %s258, 1
          %s1021 = scalar_lea.sflag [#allocation4], %s1020
          %s1022 = sand.u32 %s258, 1
          %s1023 = smul.addr %s1022, 64
          %s1024 = scalar_lea.vmem [#allocation8], %s1023
          %1025 = dma.done %s1021, 1024
        $region80: #{tpu_custom_call.1} parent=75 // pred_fallthru
          _
      $region76: #{tpu_custom_call.1} parent=5 // pred_fallthru
        _
    $region6: #{tpu_custom_call.1} parent=1 // loop_footer
      %s28 = sadd.s32 1, %s24
    $region7: #{tpu_custom_call.1} parent=1 // loop_footer_branch
      %23 = sbr.rel target = $region3
    $region8: #{tpu_custom_call.1} parent=1 // loop_exit
      _
    %1026 = vsyncpa [#allocation3], 1
    %s1027 = scalar_lea.sflag [#allocation3], 1
    %1028 = vsyncpa %s1027, 1
    %1029 = vsyncpa [#allocation6], 1
    %s1030 = scalar_lea.sflag [#allocation6], 1
    %1031 = vsyncpa %s1030, 1
    %1032 = vsyncpa [#allocation4], 1
    %s1033 = scalar_lea.sflag [#allocation4], 1
    %1034 = vsyncpa %s1033, 1

</llo_original>
